<compile_context>
chip_gen: v5e
topology: v5e:2x2
jax: 0.10.0
libtpu: 0.0.40
codegen_flags: <defaults>
</compile_context>

<pallas_src>
import jax
import jax.numpy as jnp
from jax import lax
from jax.experimental import pallas as pl
from jax.experimental.pallas import tpu as pltpu

OBS_DIM = 8      # LunarLander observation_space.shape[0]
ACT_DIM = 4      # LunarLander action_space.n
HIDDEN = 16
OMEGA = 11.0     # b = 11

# Packed-params layout: one [PARAM_ROWS, HIDDEN] f32 buffer, sublane(8)-aligned blocks.
#   rows  0: 8  -> W1  [OBS_DIM, HIDDEN]
#   row   8     -> b1  [HIDDEN]
#   rows 16:32  -> W2  [HIDDEN, HIDDEN]  (cols >= ACT_DIM zero-padded)
#   row  32     -> b2  [HIDDEN]          (cols >= ACT_DIM zero-padded)
PARAM_ROWS = 40

N_CAND = 256       # candidate betas per pass (lane axis)
N_PASSES = 3       # final bracket width 20/255^3 ~ 1.2e-6 (~ f32 ulp at |beta| <= 10)
BRACKET_LO = -10.0
BRACKET_HI = 10.0


def policy_kernel(state_ref, params_ref, out_ref):
    x = state_ref[...].astype(jnp.float32)                     # [B, OBS]

    # Single packed params buffer -> sublane-aligned, full-width static loads.
    w1 = params_ref[0:8, :]                                    # [OBS, H]
    b1 = params_ref[8:9, :]                                    # [1, H]
    w2 = params_ref[16:32, :]                                  # [H, H]  (cols >= A are 0)
    b2 = params_ref[32:33, :]                                  # [1, H]  (cols >= A are 0)

    # layer1: Linear + ReLU (MXU; tiny shapes -> pure fill/drain latency, left as-is)
    h = jnp.maximum(jnp.dot(x, w1, preferred_element_type=jnp.float32) + b1, 0.0)
    # layer2: Linear (padded to HIDDEN cols; real logits are the first ACT_DIM cols)
    logits_p = jnp.dot(h, w2, preferred_element_type=jnp.float32) + b2   # [B, H]
    logits = logits_p[:, 0:ACT_DIM]                                      # [B, A]

    # ---- mellowmax (mm_omega), from logits row 0 as in the reference ----
    c = jnp.max(logits)                                        # x.max().item()
    a0 = logits[0:1, :]                                        # action[0] -> [1, A]
    # a0 - c <= 0, so this exp cannot overflow.
    mm = c + jnp.log(jnp.mean(jnp.exp(OMEGA * (a0 - c)))) * (1.0 / OMEGA)

    # d as a column [A, 1] (actions on sublanes) without a hardware transpose:
    # broadcast the [1, A] row to [A, A], keep the diagonal, reduce along lanes.
    ri = lax.broadcasted_iota(jnp.int32, (ACT_DIM, ACT_DIM), 0)
    ci = lax.broadcasted_iota(jnp.int32, (ACT_DIM, ACT_DIM), 1)
    a0_sq = jnp.broadcast_to(a0, (ACT_DIM, ACT_DIM))
    d_col = jnp.sum(jnp.where(ri == ci, a0_sq, 0.0), axis=1, keepdims=True) - mm  # [A,1]

    # ---- mm_calculate_beta: root of f(beta) = sum(exp(beta*d)*d) on [-10, 10] ----
    # f is nondecreasing (f'(b) = sum(d^2 exp(b*d)) >= 0): evaluate N_CAND candidates
    # at once (candidates on lanes, actions on sublanes), shrink the bracket to the
    # cell where the sign flips, repeat N_PASSES times (static Python loop, unrolled).
    cand = lax.broadcasted_iota(jnp.int32, (1, N_CAND), 1).astype(jnp.float32)  # [1, G]
    inv_gm1 = 1.0 / (N_CAND - 1)                       # compile-time constant
    lo = jnp.float32(BRACKET_LO)
    hi = jnp.float32(BRACKET_HI)
    for _ in range(N_PASSES):
        step = (hi - lo) * inv_gm1
        betas = lo + step * cand                       # [1, G]
        t = d_col * betas                              # [A, G] outer product
        # overflow-safe: scaling by exp(-max_a t) per candidate preserves the sign
        t = t - jnp.max(t, axis=0, keepdims=True)
        fv = jnp.sum(jnp.exp(t) * d_col, axis=0, keepdims=True)   # [1, G], sign of f
        n_neg = jnp.sum((fv < 0.0).astype(jnp.float32))            # candidates left of root
        idx_lo = jnp.clip(n_neg - 1.0, 0.0, float(N_CAND - 1))
        idx_hi = jnp.minimum(n_neg, float(N_CAND - 1))
        lo, hi = lo + step * idx_lo, lo + step * idx_hi
    beta = 0.5 * (lo + hi)

    # ---- x = beta * x ; softmax(dim=1), exact normalization ----
    z = beta * logits
    z = z - jnp.max(z, axis=1, keepdims=True)
    e = jnp.exp(z)
    out_ref[...] = (e / jnp.sum(e, axis=1, keepdims=True)).astype(out_ref.dtype)


def pack_params(w1, b1, w2, b2):
    """Pack the four Linear params into one sublane-aligned [40, 16] f32 buffer."""
    p = jnp.zeros((PARAM_ROWS, HIDDEN), jnp.float32)
    p = p.at[0:OBS_DIM, :].set(w1.astype(jnp.float32))
    p = p.at[8, :].set(b1.reshape(HIDDEN).astype(jnp.float32))
    p = p.at[16:16 + HIDDEN, 0:ACT_DIM].set(w2.astype(jnp.float32))
    p = p.at[32, 0:ACT_DIM].set(b2.reshape(ACT_DIM).astype(jnp.float32))
    return p


@jax.jit
def policy_forward(state, params_packed):
    B = state.shape[0]
    vmem = pl.BlockSpec(memory_space=pltpu.MemorySpace.VMEM)
    return pl.pallas_call(
        policy_kernel,
        out_shape=jax.ShapeDtypeStruct((B, ACT_DIM), jnp.float32),
        in_specs=[vmem, vmem],
        out_specs=vmem,
    )(state, params_packed)


def init_params(key):
    # Deterministic init mimicking PyTorch Linear default: U(-1/sqrt(fan_in), 1/sqrt(fan_in)).
    k1, k2, k3, k4 = jax.random.split(key, 4)
    s1 = 1.0 / jnp.sqrt(jnp.float32(OBS_DIM))
    s2 = 1.0 / jnp.sqrt(jnp.float32(HIDDEN))
    w1 = jax.random.uniform(k1, (OBS_DIM, HIDDEN), jnp.float32, -s1, s1)
    b1 = jax.random.uniform(k2, (1, HIDDEN), jnp.float32, -s1, s1)
    w2 = jax.random.uniform(k3, (HIDDEN, ACT_DIM), jnp.float32, -s2, s2)
    b2 = jax.random.uniform(k4, (1, ACT_DIM), jnp.float32, -s2, s2)
    return w1, b1, w2, b2


if __name__ == "__main__":
    key = jax.random.PRNGKey(0)
    kp, kx = jax.random.split(key)
    w1, b1, w2, b2 = init_params(kp)
    params_packed = pack_params(w1, b1, w2, b2)

    B = 2
    state = jax.random.normal(kx, (B, OBS_DIM), jnp.float32)

    probs = jax.block_until_ready(policy_forward(state, params_packed))

    assert probs.shape == (B, ACT_DIM)
    assert bool(jnp.all(jnp.isfinite(probs)))
    assert bool(jnp.all(probs >= 0.0))
    # exact softmax normalization -> rows are valid probability distributions
    assert bool(jnp.all(jnp.abs(jnp.sum(probs, axis=1) - 1.0) < 1e-4))

    print("KERNEL_OK")
</pallas_src>

<mosaic_0001>
module attributes {stable_mosaic.version = 11 : i64} {
  func.func @policy_kernel(%arg0: memref<2x8xf32, #tpu.memory_space<vmem>>, %arg1: memref<40x16xf32, #tpu.memory_space<vmem>>, %arg2: memref<2x4xf32, #tpu.memory_space<vmem>>) attributes {dimension_semantics = [], scalar_prefetch = 0 : i64, scratch_operands = 0 : i64, tpu.core_type = #tpu.core_type<tc>} {
    %c0 = arith.constant 0 : index
    %c0_0 = arith.constant 0 : index
    %0 = vector.load %arg0[%c0, %c0_0] : memref<2x8xf32, #tpu.memory_space<vmem>>, vector<2x8xf32>
    %c0_1 = arith.constant 0 : index
    %c0_2 = arith.constant 0 : index
    %1 = vector.load %arg1[%c0_1, %c0_2] : memref<40x16xf32, #tpu.memory_space<vmem>>, vector<8x16xf32>
    %c8 = arith.constant 8 : index
    %c0_3 = arith.constant 0 : index
    %2 = vector.load %arg1[%c8, %c0_3] : memref<40x16xf32, #tpu.memory_space<vmem>>, vector<1x16xf32>
    %c16 = arith.constant 16 : index
    %c0_4 = arith.constant 0 : index
    %3 = vector.load %arg1[%c16, %c0_4] : memref<40x16xf32, #tpu.memory_space<vmem>>, vector<16x16xf32>
    %c32 = arith.constant 32 : index
    %c0_5 = arith.constant 0 : index
    %4 = vector.load %arg1[%c32, %c0_5] : memref<40x16xf32, #tpu.memory_space<vmem>>, vector<1x16xf32>
    %cst = arith.constant dense<0.000000e+00> : vector<2x16xf32>
    %5 = tpu.matmul %0, %1, %cst {dimension_numbers = #tpu.dot_dimension_numbers<[1], [0], [0], [1], [0, 0, 1, 1], [], []>} : vector<2x8xf32>, vector<8x16xf32>, vector<2x16xf32> -> vector<2x16xf32>
    %6 = vector.broadcast %2 : vector<1x16xf32> to vector<2x16xf32>
    %7 = arith.addf %5, %6 : vector<2x16xf32>
    %cst_6 = arith.constant 0.000000e+00 : f32
    %8 = vector.broadcast %cst_6 : f32 to vector<2x16xf32>
    %9 = arith.maximumf %7, %8 : vector<2x16xf32>
    %cst_7 = arith.constant dense<0.000000e+00> : vector<2x16xf32>
    %10 = tpu.matmul %9, %3, %cst_7 {dimension_numbers = #tpu.dot_dimension_numbers<[1], [0], [0], [1], [0, 0, 1, 1], [], []>} : vector<2x16xf32>, vector<16x16xf32>, vector<2x16xf32> -> vector<2x16xf32>
    %11 = vector.broadcast %4 : vector<1x16xf32> to vector<2x16xf32>
    %12 = arith.addf %10, %11 : vector<2x16xf32>
    %13 = vector.extract_strided_slice %12 {offsets = [0, 0], sizes = [2, 4], strides = [1, 1]} : vector<2x16xf32> to vector<2x4xf32>
    %14 = vector.shape_cast %13 : vector<2x4xf32> to vector<1x2x4xf32>
    %cst_8 = arith.constant dense<0xFF800000> : vector<1xf32>
    %15 = vector.multi_reduction <maximumf>, %14, %cst_8 [1, 2] : vector<1x2x4xf32> to vector<1xf32>
    %16 = vector.shape_cast %15 : vector<1xf32> to vector<1x1x1xf32>
    %17 = vector.extract %16[0, 0, 0] : f32 from vector<1x1x1xf32>
    %18 = vector.extract_strided_slice %13 {offsets = [0, 0], sizes = [1, 4], strides = [1, 1]} : vector<2x4xf32> to vector<1x4xf32>
    %19 = vector.broadcast %17 : f32 to vector<1x4xf32>
    %20 = arith.subf %18, %19 : vector<1x4xf32>
    %cst_9 = arith.constant 1.100000e+01 : f32
    %21 = vector.broadcast %cst_9 : f32 to vector<1x4xf32>
    %22 = arith.mulf %21, %20 : vector<1x4xf32>
    %23 = math.exp %22 : vector<1x4xf32>
    %24 = vector.shape_cast %23 : vector<1x4xf32> to vector<1x1x4xf32>
    %cst_10 = arith.constant dense<0.000000e+00> : vector<1xf32>
    %25 = vector.multi_reduction <add>, %24, %cst_10 [1, 2] : vector<1x1x4xf32> to vector<1xf32>
    %26 = vector.shape_cast %25 : vector<1xf32> to vector<1x1x1xf32>
    %27 = vector.extract %26[0, 0, 0] : f32 from vector<1x1x1xf32>
    %cst_11 = arith.constant 4.000000e+00 : f32
    %28 = arith.divf %27, %cst_11 : f32
    %29 = math.log %28 : f32
    %cst_12 = arith.constant 0.0909090936 : f32
    %30 = arith.mulf %29, %cst_12 : f32
    %31 = arith.addf %17, %30 : f32
    %32 = tpu.iota {dimensions = array<i32: 0>} : vector<4x4xi32>
    %33 = tpu.iota {dimensions = array<i32: 1>} : vector<4x4xi32>
    %34 = vector.shape_cast %18 : vector<1x4xf32> to vector<1x4xf32>
    %35 = vector.broadcast %34 : vector<1x4xf32> to vector<4x4xf32>
    %36 = arith.cmpi eq, %32, %33 : vector<4x4xi32>
    %cst_13 = arith.constant 0.000000e+00 : f32
    %37 = vector.broadcast %cst_13 : f32 to vector<4x4xf32>
    %38 = arith.select %36, %35, %37 : vector<4x4xi1>, vector<4x4xf32>
    %cst_14 = arith.constant dense<0.000000e+00> : vector<4xf32>
    %39 = vector.multi_reduction <add>, %38, %cst_14 [1] : vector<4x4xf32> to vector<4xf32>
    %40 = vector.shape_cast %39 : vector<4xf32> to vector<4x1xf32>
    %41 = vector.broadcast %31 : f32 to vector<4x1xf32>
    %42 = arith.subf %40, %41 : vector<4x1xf32>
    %43 = tpu.iota {dimensions = array<i32: 1>} : vector<1x256xi32>
    %44 = arith.sitofp %43 : vector<1x256xi32> to vector<1x256xf32>
    %cst_15 = arith.constant 1.000000e+01 : f32
    %cst_16 = arith.constant -1.000000e+01 : f32
    %45 = arith.subf %cst_15, %cst_16 : f32
    %cst_17 = arith.constant 0.00392156886 : f32
    %46 = arith.mulf %45, %cst_17 : f32
    %47 = vector.broadcast %46 : f32 to vector<1x256xf32>
    %48 = arith.mulf %47, %44 : vector<1x256xf32>
    %cst_18 = arith.constant -1.000000e+01 : f32
    %49 = vector.broadcast %cst_18 : f32 to vector<1x256xf32>
    %50 = arith.addf %49, %48 : vector<1x256xf32>
    %51 = vector.broadcast %42 : vector<4x1xf32> to vector<4x256xf32>
    %52 = vector.broadcast %50 : vector<1x256xf32> to vector<4x256xf32>
    %53 = arith.mulf %51, %52 : vector<4x256xf32>
    %cst_19 = arith.constant dense<0xFF800000> : vector<256xf32>
    %54 = vector.multi_reduction <maximumf>, %53, %cst_19 [0] : vector<4x256xf32> to vector<256xf32>
    %55 = vector.shape_cast %54 : vector<256xf32> to vector<1x256xf32>
    %56 = vector.broadcast %55 : vector<1x256xf32> to vector<4x256xf32>
    %57 = arith.subf %53, %56 : vector<4x256xf32>
    %58 = math.exp %57 : vector<4x256xf32>
    %59 = vector.broadcast %42 : vector<4x1xf32> to vector<4x256xf32>
    %60 = arith.mulf %58, %59 : vector<4x256xf32>
    %cst_20 = arith.constant dense<0.000000e+00> : vector<256xf32>
    %61 = vector.multi_reduction <add>, %60, %cst_20 [0] : vector<4x256xf32> to vector<256xf32>
    %62 = vector.shape_cast %61 : vector<256xf32> to vector<1x256xf32>
    %cst_21 = arith.constant 0.000000e+00 : f32
    %63 = vector.broadcast %cst_21 : f32 to vector<1x256xf32>
    %64 = arith.cmpf olt, %62, %63 : vector<1x256xf32>
    %65 = arith.extui %64 : vector<1x256xi1> to vector<1x256xi32>
    %66 = arith.sitofp %65 : vector<1x256xi32> to vector<1x256xf32>
    %67 = vector.shape_cast %66 : vector<1x256xf32> to vector<1x1x256xf32>
    %cst_22 = arith.constant dense<0.000000e+00> : vector<1xf32>
    %68 = vector.multi_reduction <add>, %67, %cst_22 [1, 2] : vector<1x1x256xf32> to vector<1xf32>
    %69 = vector.shape_cast %68 : vector<1xf32> to vector<1x1x1xf32>
    %70 = vector.extract %69[0, 0, 0] : f32 from vector<1x1x1xf32>
    %cst_23 = arith.constant 1.000000e+00 : f32
    %71 = arith.subf %70, %cst_23 : f32
    %cst_24 = arith.constant 0.000000e+00 : f32
    %cst_25 = arith.constant 2.550000e+02 : f32
    %72 = arith.maximumf %cst_24, %71 : f32
    %73 = arith.minimumf %cst_25, %72 : f32
    %cst_26 = arith.constant 2.550000e+02 : f32
    %74 = arith.minimumf %70, %cst_26 : f32
    %75 = arith.mulf %46, %73 : f32
    %cst_27 = arith.constant -1.000000e+01 : f32
    %76 = arith.addf %cst_27, %75 : f32
    %77 = arith.mulf %46, %74 : f32
    %cst_28 = arith.constant -1.000000e+01 : f32
    %78 = arith.addf %cst_28, %77 : f32
    %79 = arith.subf %78, %76 : f32
    %cst_29 = arith.constant 0.00392156886 : f32
    %80 = arith.mulf %79, %cst_29 : f32
    %81 = vector.broadcast %80 : f32 to vector<1x256xf32>
    %82 = arith.mulf %81, %44 : vector<1x256xf32>
    %83 = vector.broadcast %76 : f32 to vector<1x256xf32>
    %84 = arith.addf %83, %82 : vector<1x256xf32>
    %85 = vector.broadcast %42 : vector<4x1xf32> to vector<4x256xf32>
    %86 = vector.broadcast %84 : vector<1x256xf32> to vector<4x256xf32>
    %87 = arith.mulf %85, %86 : vector<4x256xf32>
    %cst_30 = arith.constant dense<0xFF800000> : vector<256xf32>
    %88 = vector.multi_reduction <maximumf>, %87, %cst_30 [0] : vector<4x256xf32> to vector<256xf32>
    %89 = vector.shape_cast %88 : vector<256xf32> to vector<1x256xf32>
    %90 = vector.broadcast %89 : vector<1x256xf32> to vector<4x256xf32>
    %91 = arith.subf %87, %90 : vector<4x256xf32>
    %92 = math.exp %91 : vector<4x256xf32>
    %93 = vector.broadcast %42 : vector<4x1xf32> to vector<4x256xf32>
    %94 = arith.mulf %92, %93 : vector<4x256xf32>
    %cst_31 = arith.constant dense<0.000000e+00> : vector<256xf32>
    %95 = vector.multi_reduction <add>, %94, %cst_31 [0] : vector<4x256xf32> to vector<256xf32>
    %96 = vector.shape_cast %95 : vector<256xf32> to vector<1x256xf32>
    %cst_32 = arith.constant 0.000000e+00 : f32
    %97 = vector.broadcast %cst_32 : f32 to vector<1x256xf32>
    %98 = arith.cmpf olt, %96, %97 : vector<1x256xf32>
    %99 = arith.extui %98 : vector<1x256xi1> to vector<1x256xi32>
    %100 = arith.sitofp %99 : vector<1x256xi32> to vector<1x256xf32>
    %101 = vector.shape_cast %100 : vector<1x256xf32> to vector<1x1x256xf32>
    %cst_33 = arith.constant dense<0.000000e+00> : vector<1xf32>
    %102 = vector.multi_reduction <add>, %101, %cst_33 [1, 2] : vector<1x1x256xf32> to vector<1xf32>
    %103 = vector.shape_cast %102 : vector<1xf32> to vector<1x1x1xf32>
    %104 = vector.extract %103[0, 0, 0] : f32 from vector<1x1x1xf32>
    %cst_34 = arith.constant 1.000000e+00 : f32
    %105 = arith.subf %104, %cst_34 : f32
    %cst_35 = arith.constant 0.000000e+00 : f32
    %cst_36 = arith.constant 2.550000e+02 : f32
    %106 = arith.maximumf %cst_35, %105 : f32
    %107 = arith.minimumf %cst_36, %106 : f32
    %cst_37 = arith.constant 2.550000e+02 : f32
    %108 = arith.minimumf %104, %cst_37 : f32
    %109 = arith.mulf %80, %107 : f32
    %110 = arith.addf %76, %109 : f32
    %111 = arith.mulf %80, %108 : f32
    %112 = arith.addf %76, %111 : f32
    %113 = arith.subf %112, %110 : f32
    %cst_38 = arith.constant 0.00392156886 : f32
    %114 = arith.mulf %113, %cst_38 : f32
    %115 = vector.broadcast %114 : f32 to vector<1x256xf32>
    %116 = arith.mulf %115, %44 : vector<1x256xf32>
    %117 = vector.broadcast %110 : f32 to vector<1x256xf32>
    %118 = arith.addf %117, %116 : vector<1x256xf32>
    %119 = vector.broadcast %42 : vector<4x1xf32> to vector<4x256xf32>
    %120 = vector.broadcast %118 : vector<1x256xf32> to vector<4x256xf32>
    %121 = arith.mulf %119, %120 : vector<4x256xf32>
    %cst_39 = arith.constant dense<0xFF800000> : vector<256xf32>
    %122 = vector.multi_reduction <maximumf>, %121, %cst_39 [0] : vector<4x256xf32> to vector<256xf32>
    %123 = vector.shape_cast %122 : vector<256xf32> to vector<1x256xf32>
    %124 = vector.broadcast %123 : vector<1x256xf32> to vector<4x256xf32>
    %125 = arith.subf %121, %124 : vector<4x256xf32>
    %126 = math.exp %125 : vector<4x256xf32>
    %127 = vector.broadcast %42 : vector<4x1xf32> to vector<4x256xf32>
    %128 = arith.mulf %126, %127 : vector<4x256xf32>
    %cst_40 = arith.constant dense<0.000000e+00> : vector<256xf32>
    %129 = vector.multi_reduction <add>, %128, %cst_40 [0] : vector<4x256xf32> to vector<256xf32>
    %130 = vector.shape_cast %129 : vector<256xf32> to vector<1x256xf32>
    %cst_41 = arith.constant 0.000000e+00 : f32
    %131 = vector.broadcast %cst_41 : f32 to vector<1x256xf32>
    %132 = arith.cmpf olt, %130, %131 : vector<1x256xf32>
    %133 = arith.extui %132 : vector<1x256xi1> to vector<1x256xi32>
    %134 = arith.sitofp %133 : vector<1x256xi32> to vector<1x256xf32>
    %135 = vector.shape_cast %134 : vector<1x256xf32> to vector<1x1x256xf32>
    %cst_42 = arith.constant dense<0.000000e+00> : vector<1xf32>
    %136 = vector.multi_reduction <add>, %135, %cst_42 [1, 2] : vector<1x1x256xf32> to vector<1xf32>
    %137 = vector.shape_cast %136 : vector<1xf32> to vector<1x1x1xf32>
    %138 = vector.extract %137[0, 0, 0] : f32 from vector<1x1x1xf32>
    %cst_43 = arith.constant 1.000000e+00 : f32
    %139 = arith.subf %138, %cst_43 : f32
    %cst_44 = arith.constant 0.000000e+00 : f32
    %cst_45 = arith.constant 2.550000e+02 : f32
    %140 = arith.maximumf %cst_44, %139 : f32
    %141 = arith.minimumf %cst_45, %140 : f32
    %cst_46 = arith.constant 2.550000e+02 : f32
    %142 = arith.minimumf %138, %cst_46 : f32
    %143 = arith.mulf %114, %141 : f32
    %144 = arith.addf %110, %143 : f32
    %145 = arith.mulf %114, %142 : f32
    %146 = arith.addf %110, %145 : f32
    %147 = arith.addf %144, %146 : f32
    %cst_47 = arith.constant 5.000000e-01 : f32
    %148 = arith.mulf %cst_47, %147 : f32
    %149 = vector.broadcast %148 : f32 to vector<2x4xf32>
    %150 = arith.mulf %149, %13 : vector<2x4xf32>
    %cst_48 = arith.constant dense<0xFF800000> : vector<2xf32>
    %151 = vector.multi_reduction <maximumf>, %150, %cst_48 [1] : vector<2x4xf32> to vector<2xf32>
    %152 = vector.shape_cast %151 : vector<2xf32> to vector<2x1xf32>
    %153 = vector.broadcast %152 : vector<2x1xf32> to vector<2x4xf32>
    %154 = arith.subf %150, %153 : vector<2x4xf32>
    %155 = math.exp %154 : vector<2x4xf32>
    %cst_49 = arith.constant dense<0.000000e+00> : vector<2xf32>
    %156 = vector.multi_reduction <add>, %155, %cst_49 [1] : vector<2x4xf32> to vector<2xf32>
    %157 = vector.shape_cast %156 : vector<2xf32> to vector<2x1xf32>
    %158 = vector.broadcast %157 : vector<2x1xf32> to vector<2x4xf32>
    %159 = arith.divf %155, %158 : vector<2x4xf32>
    %c0_50 = arith.constant 0 : index
    %c0_51 = arith.constant 0 : index
    %160 = vector.load %arg2[%c0_50, %c0_51] : memref<2x4xf32, #tpu.memory_space<vmem>>, vector<2x4xf32>
    tpu.vector_store %arg2[%c0_50, %c0_51], %159 {strides = array<i32>} : memref<2x4xf32, #tpu.memory_space<vmem>>, vector<2x4xf32>,
    return
  }
}

</mosaic_0001>

<llo_original>
// kernel: policy_forward.1
$region0: #{policy_forward.1}
  #allocation0 [shape = 'u32[]', space=smem, size = 0x4, offset = 0x4, fixed_abs, tag = 'smem constant byte address 0x4 - core index']
  #allocation1 [shape = 'u32[72,128]{1,0:T(1,128)}', space=vmem, size = 0x9000, scoped, tag = 'internal scratch']
  %s0 = inlined_call_operand.vmem [shape: f32[2,8], index: 0, kind: input, shape index: {}]
  %s1 = inlined_call_operand.vmem [shape: f32[40,16], index: 1, kind: input, shape index: {}]
  %s2 = inlined_call_operand.hbm [shape: f32[2,4], index: 2, kind: output, shape index: {}]
  %s3 = sld [smem:[#allocation0]]
  $region18: #{policy_forward.1} parent=0
    _
  %s5 = ssub.s32 1, %s3
  %s6 = scalar_select 0, %s5, %s3
  $region1: #{policy_forward.1} parent=0
    #allocation2 [shape = 'u8[1024]{0}', space=vmem, size = 0x400, scoped, tag = 'output window, operand 0, single buffered']
    #allocation3 [shape = 's32[1]{0}', space=sflag, size = 0x4, scoped, tag = 'scoped memory for policy_forward.1']
    %7 = vsyncpa [#allocation3], 0
    // Predicated region
    $region2: #{policy_forward.1} parent=1 // pred_check
      _
    $region3: #{policy_forward.1} parent=1 // pred_check_branch
      %9 = sbr.rel (0) target = $region5
    $region4: #{policy_forward.1} parent=1 // pred_region
      _
    $region5: #{policy_forward.1} parent=1 // pred_fallthru
      _
    // Predicated region
    $region6: #{policy_forward.1} parent=1 // pred_check
      _
    $region7: #{policy_forward.1} parent=1 // pred_check_branch
      %11 = sbr.rel (0) target = $region9
    $region8: #{policy_forward.1} parent=1 // pred_region
      _
    $region9: #{policy_forward.1} parent=1 // pred_fallthru
      _
    %v12 = vld [vmem:[%s0] sm:$0x3]
    %v13 = vld [vmem:[%s1] sm:$0xff]
    %v14 = vld [vmem:[%s1 + $0x8] sm:$0x1]
    %v15 = vld [vmem:[%s1 + $0x10] sm:$0xff]
    %v16 = vld [vmem:[%s1 + $0x18] sm:$0xff]
    %v17 = vld [vmem:[%s1 + $0x20] sm:$0x1]
    %v18 = vperm.slane %v14, 0
    %vm19 = vcmask 64512
    %v21 = vsel %vm19, %v12, 0
    %23 = vmatpush.msra.mxu0 0.0
    %24 = vmatpush.msra.mxu0 0.0
    %25 = vmatpush.msra.mxu0 0.0
    %26 = vmatpush.msra.mxu0 0.0
    %27 = vmatpush.msra.mxu0 0.0
    %28 = vmatpush.msra.mxu0 0.0
    %29 = vmatpush.msra.mxu0 0.0
    %30 = vmatpush.msra.mxu0 0.0
    %31 = vmatpush.msra.mxu0 0.0
    %32 = vmatpush.msra.mxu0 0.0
    %33 = vmatpush.msra.mxu0 0.0
    %34 = vmatpush.msra.mxu0 0.0
    %35 = vmatpush.msra.mxu0 0.0
    %36 = vmatpush.msra.mxu0 0.0
    %37 = vmatpush.msra.mxu0 0.0
    %38 = vmatpush.msra.mxu0 %v13
    %39 = vmatmul.f32.gmra.mxu0 %v21
    %v40 = vpop.f32.mrf.mxu0
    %v41 = vadd.f32 %v18, %v40
    %42 = vdwg.mxu0
    %v43 = vmax.f32 %v41, 0.0
    %v44 = vperm.slane %v17, 0
    %vm45 = vcmask 130048
    %v47 = vsel %vm45, %v43, 0
    %49 = vmatpush.msra.mxu0 0.0
    %50 = vmatpush.msra.mxu0 0.0
    %51 = vmatpush.msra.mxu0 0.0
    %52 = vmatpush.msra.mxu0 0.0
    %53 = vmatpush.msra.mxu0 0.0
    %54 = vmatpush.msra.mxu0 0.0
    %55 = vmatpush.msra.mxu0 0.0
    %56 = vmatpush.msra.mxu0 0.0
    %57 = vmatpush.msra.mxu0 0.0
    %58 = vmatpush.msra.mxu0 0.0
    %59 = vmatpush.msra.mxu0 0.0
    %60 = vmatpush.msra.mxu0 0.0
    %61 = vmatpush.msra.mxu0 0.0
    %62 = vmatpush.msra.mxu0 0.0
    %63 = vmatpush.msra.mxu0 %v16
    %64 = vmatpush.msra.mxu0 %v15
    %65 = vmatmul.f32.gmra.mxu0 %v47
    %v66 = vpop.f32.mrf.mxu0
    %v67 = vadd.f32 %v44, %v66
    %68 = vdwg.mxu0
    %vm69 = vcmask 25600
    %v70 = vsel %vm69, %v67, -inf
    %71 = vmax.xlane.f32.xlu0 %v70
    %v72 = vpop.xlane.xlu0 %71
    %v73 = vrot.slane %v72, 4
    %v74 = vmax.f32 %v72, %v73
    %v75 = vrot.slane %v74, 2
    %v76 = vmax.f32 %v74, %v75
    %v77 = vrot.slane %v76, 1
    %v78 = vmax.f32 %v76, %v77
    %s79 = vtos %v78
    %v80 = vstv %s79
    %v81 = vsub.f32 %v67, %v80
    %v82 = vmul.f32 %v81, 11.0
    %v83 = vmul.f32 %v82, 1.442695
    %v84 = vpow.pop %v83
    %vm85 = vcmask 24576
    %v86 = vsel %vm85, %v84, 0.0
    %87 = vadd.xlane.f32.xlu0 %v86
    %v88 = vpop.xlane.xlu0 %87
    %v89 = vrot.slane %v88, 4
    %v90 = vadd.f32 %v88, %v89
    %v91 = vrot.slane %v90, 2
    %v92 = vadd.f32 %v90, %v91
    %v93 = vrot.slane %v92, 1
    %v94 = vadd.f32 %v92, %v93
    %s95 = vtos %v94
    %v96 = vrcp.pop 4.0
    %v97 = vmul.f32 4.0, %v96
    %v98 = vsub.f32 1.0, %v97
    %v99 = vmul.f32 %v96, %v98
    %v100 = vadd.f32 %v96, %v99
    %vm101 = vweird.f32 %v96
    %v102 = vsel %vm101, %v96, %v100
    %s103 = vtos %v102
    %s104 = smul.f32 %s95, %s103
    %v105 = vstv %s104
    %v106 = vlog2.pop %v105
    %v107 = vmul.f32 %v106, 0.6931472
    %s108 = vtos %v107
    %s109 = smul.f32 %s108, 0.09090909
    %s110 = sadd.f32 %s79, %s109
    %v111 = vlaneseq
    %v112 = vshrl.u32 %v111, 7
    %v113 = vlaneseq
    %v114 = vand.u32 %v113, 127
    %v115 = vperm.slane %v67, 0
    %vm116 = vcmp.eq.s32.totalorder %v112, %v114
    %v117 = vsel %vm116, %v115, 0.0
    %vm118 = vcmask 27648
    %v119 = vsel %vm118, %v117, 0.0
    %120 = vadd.xlane.f32.xlu0 %v119
    %v121 = vpop.xlane.xlu0 %120
    %v122 = vstv %s110
    %v123 = vsub.f32 %v121, %v122
    %v124 = vadd.s32 %v114, 128
    %v125 = vcvt.s32.f32 %v114
    %v126 = vcvt.s32.f32 %v124
    %v127 = vmul.f32 %v125, 0.078431375
    %v128 = vmul.f32 %v126, 0.078431375
    %v129 = vadd.f32 %v127, -10.0
    %v130 = vadd.f32 %v128, -10.0
    %v131 = vmul.f32 %v123, %v129
    %v132 = vmul.f32 %v123, %v130
    %vm133 = vcmask 1043456
    %v134 = vsel %vm133, %v131, -inf
    %v135 = vrot.slane %v134, 4
    %v136 = vmax.f32 %v134, %v135
    %v137 = vrot.slane %v136, 2
    %v138 = vmax.f32 %v136, %v137
    %v139 = vrot.slane %v138, 1
    %v140 = vmax.f32 %v138, %v139
    %v141 = vsel %vm133, %v132, -inf
    %v142 = vrot.slane %v141, 4
    %v143 = vmax.f32 %v141, %v142
    %v144 = vrot.slane %v143, 2
    %v145 = vmax.f32 %v143, %v144
    %v146 = vrot.slane %v145, 1
    %v147 = vmax.f32 %v145, %v146
    %v148 = vsub.f32 %v131, %v140
    %v149 = vsub.f32 %v132, %v147
    %v150 = vmul.f32 %v148, 1.442695
    %v151 = vpow.pop %v150
    %v152 = vmul.f32 %v149, 1.442695
    %v153 = vpow.pop %v152
    %v154 = vmul.f32 %v151, %v123
    %v155 = vmul.f32 %v153, %v123
    %v156 = vsel %vm133, %v154, 0.0
    %v157 = vrot.slane %v156, 4
    %v158 = vadd.f32 %v156, %v157
    %v159 = vrot.slane %v158, 2
    %v160 = vadd.f32 %v158, %v159
    %v161 = vrot.slane %v160, 1
    %v162 = vadd.f32 %v160, %v161
    %v163 = vsel %vm133, %v155, 0.0
    %v164 = vrot.slane %v163, 4
    %v165 = vadd.f32 %v163, %v164
    %v166 = vrot.slane %v165, 2
    %v167 = vadd.f32 %v165, %v166
    %v168 = vrot.slane %v167, 1
    %v169 = vadd.f32 %v167, %v168
    %vm170 = vcmp.lt.f32.partialorder %v162, 0.0
    %vm171 = vcmp.lt.f32.partialorder %v169, 0.0
    %v172 = vsel %vm170, 1, 0
    %v173 = vsel %vm171, 1, 0
    %v174 = vcvt.s32.f32 %v172
    %v175 = vcvt.s32.f32 %v173
    %vm176 = vcmask 1040384
    %v177 = vsel %vm176, %v174, 0.0
    %v178 = vsel %vm176, %v175, 0.0
    %v179 = vadd.f32 %v177, %v178
    %180 = vadd.xlane.f32.xlu0 %v179
    %v181 = vpop.xlane.xlu0 %180
    %v182 = vrot.slane %v181, 4
    %v183 = vadd.f32 %v181, %v182
    %v184 = vrot.slane %v183, 2
    %v185 = vadd.f32 %v183, %v184
    %v186 = vrot.slane %v185, 1
    %v187 = vadd.f32 %v185, %v186
    %s188 = vtos %v187
    %s189 = ssub.f32 %s188, 1.0
    %s190 = smax.f32 %s189, 0.0
    %s191 = smin.f32 %s190, 255.0
    %s192 = smin.f32 %s188, 255.0
    %s193 = smul.f32 %s191, 0.078431375
    %s194 = sadd.f32 %s193, -10.0
    %s195 = smul.f32 %s192, 0.078431375
    %s196 = sadd.f32 %s195, -10.0
    %s197 = ssub.f32 %s196, %s194
    %s198 = smul.f32 %s197, 0.003921569
    %v199 = vstv %s198
    %v200 = vmul.f32 %v199, %v125
    %v201 = vmul.f32 %v199, %v126
    %v202 = vstv %s194
    %v203 = vadd.f32 %v202, %v200
    %v204 = vadd.f32 %v202, %v201
    %v205 = vmul.f32 %v123, %v203
    %v206 = vmul.f32 %v123, %v204
    %v207 = vsel %vm133, %v205, -inf
    %v208 = vrot.slane %v207, 4
    %v209 = vmax.f32 %v207, %v208
    %v210 = vrot.slane %v209, 2
    %v211 = vmax.f32 %v209, %v210
    %v212 = vrot.slane %v211, 1
    %v213 = vmax.f32 %v211, %v212
    %v214 = vsel %vm133, %v206, -inf
    %v215 = vrot.slane %v214, 4
    %v216 = vmax.f32 %v214, %v215
    %v217 = vrot.slane %v216, 2
    %v218 = vmax.f32 %v216, %v217
    %v219 = vrot.slane %v218, 1
    %v220 = vmax.f32 %v218, %v219
    %v221 = vsub.f32 %v205, %v213
    %v222 = vsub.f32 %v206, %v220
    %v223 = vmul.f32 %v221, 1.442695
    %v224 = vpow.pop %v223
    %v225 = vmul.f32 %v222, 1.442695
    %v226 = vpow.pop %v225
    %v227 = vmul.f32 %v224, %v123
    %v228 = vmul.f32 %v226, %v123
    %v229 = vsel %vm133, %v227, 0.0
    %v230 = vrot.slane %v229, 4
    %v231 = vadd.f32 %v229, %v230
    %v232 = vrot.slane %v231, 2
    %v233 = vadd.f32 %v231, %v232
    %v234 = vrot.slane %v233, 1
    %v235 = vadd.f32 %v233, %v234
    %v236 = vsel %vm133, %v228, 0.0
    %v237 = vrot.slane %v236, 4
    %v238 = vadd.f32 %v236, %v237
    %v239 = vrot.slane %v238, 2
    %v240 = vadd.f32 %v238, %v239
    %v241 = vrot.slane %v240, 1
    %v242 = vadd.f32 %v240, %v241
    %vm243 = vcmp.lt.f32.partialorder %v235, 0.0
    %vm244 = vcmp.lt.f32.partialorder %v242, 0.0
    %v245 = vsel %vm243, 1, 0
    %v246 = vsel %vm244, 1, 0
    %v247 = vcvt.s32.f32 %v245
    %v248 = vcvt.s32.f32 %v246
    %v249 = vsel %vm176, %v247, 0.0
    %v250 = vsel %vm176, %v248, 0.0
    %v251 = vadd.f32 %v249, %v250
    %252 = vadd.xlane.f32.xlu0 %v251
    %v253 = vpop.xlane.xlu0 %252
    %v254 = vrot.slane %v253, 4
    %v255 = vadd.f32 %v253, %v254
    %v256 = vrot.slane %v255, 2
    %v257 = vadd.f32 %v255, %v256
    %v258 = vrot.slane %v257, 1
    %v259 = vadd.f32 %v257, %v258
    %s260 = vtos %v259
    %s261 = ssub.f32 %s260, 1.0
    %s262 = smax.f32 %s261, 0.0
    %s263 = smin.f32 %s262, 255.0
    %s264 = smin.f32 %s260, 255.0
    %s265 = smul.f32 %s198, %s263
    %s266 = sadd.f32 %s194, %s265
    %s267 = smul.f32 %s198, %s264
    %s268 = sadd.f32 %s194, %s267
    %s269 = ssub.f32 %s268, %s266
    %s270 = smul.f32 %s269, 0.003921569
    %v271 = vstv %s270
    %v272 = vmul.f32 %v271, %v125
    %v273 = vmul.f32 %v271, %v126
    %v274 = vstv %s266
    %v275 = vadd.f32 %v274, %v272
    %v276 = vadd.f32 %v274, %v273
    %v277 = vmul.f32 %v123, %v275
    %v278 = vmul.f32 %v123, %v276
    %v279 = vsel %vm133, %v277, -inf
    %v280 = vrot.slane %v279, 4
    %v281 = vmax.f32 %v279, %v280
    %v282 = vrot.slane %v281, 2
    %v283 = vmax.f32 %v281, %v282
    %v284 = vrot.slane %v283, 1
    %v285 = vmax.f32 %v283, %v284
    %v286 = vsel %vm133, %v278, -inf
    %v287 = vrot.slane %v286, 4
    %v288 = vmax.f32 %v286, %v287
    %v289 = vrot.slane %v288, 2
    %v290 = vmax.f32 %v288, %v289
    %v291 = vrot.slane %v290, 1
    %v292 = vmax.f32 %v290, %v291
    %v293 = vsub.f32 %v277, %v285
    %v294 = vsub.f32 %v278, %v292
    %v295 = vmul.f32 %v293, 1.442695
    %v296 = vpow.pop %v295
    %v297 = vmul.f32 %v294, 1.442695
    %v298 = vpow.pop %v297
    %v299 = vmul.f32 %v296, %v123
    %v300 = vmul.f32 %v298, %v123
    %v301 = vsel %vm133, %v299, 0.0
    %v302 = vrot.slane %v301, 4
    %v303 = vadd.f32 %v301, %v302
    %v304 = vrot.slane %v303, 2
    %v305 = vadd.f32 %v303, %v304
    %v306 = vrot.slane %v305, 1
    %v307 = vadd.f32 %v305, %v306
    %v308 = vsel %vm133, %v300, 0.0
    %v309 = vrot.slane %v308, 4
    %v310 = vadd.f32 %v308, %v309
    %v311 = vrot.slane %v310, 2
    %v312 = vadd.f32 %v310, %v311
    %v313 = vrot.slane %v312, 1
    %v314 = vadd.f32 %v312, %v313
    %vm315 = vcmp.lt.f32.partialorder %v307, 0.0
    %vm316 = vcmp.lt.f32.partialorder %v314, 0.0
    %v317 = vsel %vm315, 1, 0
    %v318 = vsel %vm316, 1, 0
    %v319 = vcvt.s32.f32 %v317
    %v320 = vcvt.s32.f32 %v318
    %v321 = vsel %vm176, %v319, 0.0
    %v322 = vsel %vm176, %v320, 0.0
    %v323 = vadd.f32 %v321, %v322
    %324 = vadd.xlane.f32.xlu0 %v323
    %v325 = vpop.xlane.xlu0 %324
    %v326 = vrot.slane %v325, 4
    %v327 = vadd.f32 %v325, %v326
    %v328 = vrot.slane %v327, 2
    %v329 = vadd.f32 %v327, %v328
    %v330 = vrot.slane %v329, 1
    %v331 = vadd.f32 %v329, %v330
    %s332 = vtos %v331
    %s333 = ssub.f32 %s332, 1.0
    %s334 = smax.f32 %s333, 0.0
    %s335 = smin.f32 %s334, 255.0
    %s336 = smin.f32 %s332, 255.0
    %s337 = smul.f32 %s270, %s335
    %s338 = sadd.f32 %s266, %s337
    %s339 = smul.f32 %s270, %s336
    %s340 = sadd.f32 %s266, %s339
    %s341 = sadd.f32 %s338, %s340
    %s342 = smul.f32 %s341, 0.5
    %v343 = vstv %s342
    %v344 = vmul.f32 %v343, %v67
    %v345 = vsel %vm69, %v344, -inf
    %346 = vmax.xlane.f32.xlu0 %v345
    %v347 = vpop.xlane.xlu0 %346
    %v348 = vsub.f32 %v344, %v347
    %v349 = vmul.f32 %v348, 1.442695
    %v350 = vpow.pop %v349
    %v351 = vsel %vm69, %v350, 0.0
    %352 = vadd.xlane.f32.xlu0 %v351
    %v353 = vpop.xlane.xlu0 %352
    %v354 = vrcp.pop %v353
    %v355 = vmul.f32 %v353, %v354
    %v356 = vsub.f32 1.0, %v355
    %v357 = vmul.f32 %v354, %v356
    %v358 = vadd.f32 %v354, %v357
    %vm359 = vweird.f32 %v353
    %vm360 = vweird.f32 %v354
    %vm361 = vmor %vm359, %vm360
    %v362 = vsel %vm361, %v354, %v358
    %v363 = vand.u32 2147483647, %v353
    %vm364 = vcmp.eq.f32.partialorder %v363, 8.507059e+37
    %v365 = vand.u32 %v353, 2147483648
    %v366 = vor.u32 1.1754944e-38, %v365
    %v367 = vsel %vm364, %v366, %v362
    %v368 = vmul.f32 %v350, %v367
    %369 = vst.msk [vmem:[#allocation2] sm:$0x3] %vm69, %v368
    // Predicated region
    $region10: #{policy_forward.1} parent=1 // pred_check
      _
    $region11: #{policy_forward.1} parent=1 // pred_check_branch
      %371 = sbr.rel (0) target = $region13
    $region12: #{policy_forward.1} parent=1 // pred_region
      %373 = vsyncadd [#allocation3], 0
      %s375 = sshll.u32 [#allocation2], 4
      %s376 = int_to_ptr.vmem [resolvable:$true] %s375
      %s377 = sshll.u32 %s2, 4
      %s378 = int_to_ptr.hbm [resolvable:$true] %s377
      %380 = dma.vmem_to_hbm [thread:$0]  %s376, 32, %s378, [#allocation3]
    $region13: #{policy_forward.1} parent=1 // pred_fallthru
      _
    // Predicated region
    $region14: #{policy_forward.1} parent=1 // pred_check
      _
    $region15: #{policy_forward.1} parent=1 // pred_check_branch
      %382 = sbr.rel (0) target = $region17
    $region16: #{policy_forward.1} parent=1 // pred_region
      %384 = dma.done [#allocation3], 32
    $region17: #{policy_forward.1} parent=1 // pred_fallthru
      _
    %385 = vsyncpa [#allocation3], 1

</llo_original>
